<compile_context>
chip_gen: v6e
topology: v6e:2x2x1
jax: 0.10.0
libtpu: 0.0.40
codegen_flags: <defaults>
</compile_context>

<pallas_src>
import jax
import jax.numpy as jnp
from jax.experimental import pallas as pl
from jax.experimental.pallas import tpu as pltpu

INPUT_SIZE = 5
HIDDEN_SIZE = 5
OUT_SIZE = 1

F_PAD = 8          # padded input-feature (contraction) dim: 5 inputs + 1 bias lane + 2 zero
H_PAD = 128        # lane dim of the packed parameter slab (exactly one (8,128) vreg)

BIAS_ROW = INPUT_SIZE        # slab row carrying b1 (picked up by the augmented-1 lane of x)
W2_ROW = INPUT_SIZE + 1      # slab row carrying [w2 | b2 | 0...]

ROW_TILE_MAX = 2048          # per-step tile cap: keeps double-buffered VMEM << 16 MiB (v5e default)
SINGLE_BLOCK_MAX = 2048      # batches up to this size run as ONE block (no grid, no step overhead)
MIN_GRID_STEPS = 8           # large batches: keep >= 8 steps so v7x megacore can split the axis


def _mlp_kernel(x_ref, p_ref, o_ref):
    # x: (ROW_TILE, 8)   -- lanes 0..4 = input, lane 5 = 1.0 (bias carrier), lanes 6..7 = 0
    # p: (8, 128)        -- rows 0..4 = W1^T, row 5 = [b1 | 1], row 6 = [w2 | b2]; one vreg
    # o: (ROW_TILE, 1)   -- sigmoid(z); padded rows hold 0.5 and are sliced off by the wrapper
    x = x_ref[...]
    p = p_ref[...]                                   # single (8,128) vreg, loaded once
    # Layer 1 (+ b1 via the augmented-1 lane), fused ReLU. h[:, HIDDEN_SIZE] == 1.0 for real
    # rows so the second-layer bias folds into the lane reduction below.
    h = jnp.maximum(jnp.dot(x, p, preferred_element_type=jnp.float32), 0.0)   # (ROW_TILE, 128)
    # Layer 2: out_features == 1 -> VPU multiply + XLU lane reduction against one slab row
    # (sliced from the already-loaded vreg; no second VMEM load, no second MXU dot).
    w2b2 = p[W2_ROW:W2_ROW + 1, :]                   # (1, 128)
    z = jnp.sum(h * w2b2, axis=-1, keepdims=True)    # (ROW_TILE, 1)
    # Exact sigmoid (EUP exp + true divide) — no approx reciprocal.
    o_ref[...] = 1.0 / (1.0 + jnp.exp(-z))


def pack_params(w1, b1, w2, b2):
    """One-time packing of all parameters into a single (8, 128) tile-aligned slab.

    Call OUTSIDE the per-example path; the slab is reused verbatim by every forward
    call (no per-call weight padding), and it is DMA'd into VMEM exactly once per
    pallas_call (its BlockSpec index_map is constant across the grid).
    """
    p = jnp.zeros((F_PAD, H_PAD), jnp.float32)
    p = p.at[:INPUT_SIZE, :HIDDEN_SIZE].set(w1.T)
    p = p.at[BIAS_ROW, :HIDDEN_SIZE].set(b1)
    p = p.at[BIAS_ROW, HIDDEN_SIZE].set(1.0)     # propagates the 1-lane into h for b2
    p = p.at[W2_ROW, :HIDDEN_SIZE].set(w2[0])
    p = p.at[W2_ROW, HIDDEN_SIZE].set(b2[0])
    return p


def _choose_tiling(b):
    """Return (b_pad, row_tile). Small batches -> single block; large -> >=8 grid steps."""
    b8 = -(-b // 8) * 8                          # sublane-align the batch dim
    if b8 <= SINGLE_BLOCK_MAX:
        return b8, b8                            # whole (padded) batch as one block, grid == 1
    tile = ((b8 // MIN_GRID_STEPS) // 128) * 128  # multiple of 128 (lane/sublane-legal blocks)
    tile = max(128, min(ROW_TILE_MAX, tile))
    b_pad = -(-b8 // tile) * tile
    return b_pad, tile


def simple_nn_1_forward(x, packed_params):
    """x: (INPUT_SIZE,) or (B, INPUT_SIZE) f32. Returns (1,) or (B, 1), like the torch module."""
    squeeze = x.ndim == 1
    x2 = x[None, :] if squeeze else x
    b = x2.shape[0]
    b_pad, row_tile = _choose_tiling(b)

    # Per-call work: only the tiny 8-lane activation padding; weights are pre-packed.
    x_p = jnp.zeros((b_pad, F_PAD), jnp.float32)
    x_p = x_p.at[:b, :INPUT_SIZE].set(x2)
    x_p = x_p.at[:b, INPUT_SIZE].set(1.0)        # augmented-1 lane carries both biases

    out_p = pl.pallas_call(
        _mlp_kernel,
        out_shape=jax.ShapeDtypeStruct((b_pad, OUT_SIZE), jnp.float32),
        grid=(b_pad // row_tile,),
        in_specs=[
            pl.BlockSpec((row_tile, F_PAD), lambda i: (i, 0)),   # last dim == full array dim (8)
            pl.BlockSpec((F_PAD, H_PAD), lambda i: (0, 0)),      # slab resident across the grid
        ],
        out_specs=pl.BlockSpec((row_tile, OUT_SIZE), lambda i: (i, 0)),  # last dim == full (1)
        compiler_params=pltpu.CompilerParams(dimension_semantics=("parallel",)),
    )(x_p, packed_params)

    out = out_p[:b, :]                           # drop padded rows (they hold sigmoid(0)=0.5)
    return out[0] if squeeze else out


def _init_params(key):
    """Deterministic init mimicking nn.Linear's U(-1/sqrt(fan_in), 1/sqrt(fan_in))."""
    k1, k2, k3, k4 = jax.random.split(key, 4)
    bound1 = 1.0 / (INPUT_SIZE ** 0.5)
    bound2 = 1.0 / (HIDDEN_SIZE ** 0.5)
    w1 = jax.random.uniform(k1, (HIDDEN_SIZE, INPUT_SIZE), jnp.float32, -bound1, bound1)
    b1 = jax.random.uniform(k2, (HIDDEN_SIZE,), jnp.float32, -bound1, bound1)
    w2 = jax.random.uniform(k3, (OUT_SIZE, HIDDEN_SIZE), jnp.float32, -bound2, bound2)
    b2 = jax.random.uniform(k4, (OUT_SIZE,), jnp.float32, -bound2, bound2)
    return w1, b1, w2, b2


if __name__ == "__main__":
    key = jax.random.PRNGKey(0)
    w1, b1, w2, b2 = _init_params(key)
    packed = pack_params(w1, b1, w2, b2)         # done once, outside the hot path

    # Same input as the source script: tensor([3.0, 2.5, 1.2, 9.9, 123.0])
    x_single = jnp.array([3.0, 2.5, 1.2, 9.9, 123.0], dtype=jnp.float32)
    # Small batch (16 rows) exercising the single-block (no-grid) path.
    x_batch = jnp.concatenate(
        [x_single[None, :],
         jax.random.normal(jax.random.PRNGKey(1), (15, INPUT_SIZE), jnp.float32)],
        axis=0,
    )
    # Larger batch (> SINGLE_BLOCK_MAX) exercising the multi-step gridded path (9 steps of 256).
    x_big = jax.random.normal(jax.random.PRNGKey(2), (2304, INPUT_SIZE), jnp.float32)

    fwd = jax.jit(simple_nn_1_forward)
    out1 = jax.block_until_ready(fwd(x_single, packed))
    out_b = jax.block_until_ready(fwd(x_batch, packed))
    out_big = jax.block_until_ready(fwd(x_big, packed))

    # Pure-JAX reference check.
    def ref_fn(x):
        h = jnp.maximum(x @ w1.T + b1, 0.0)
        return jax.nn.sigmoid(h @ w2.T + b2)

    assert out1.shape == (1,), out1.shape
    assert out_b.shape == (16, 1), out_b.shape
    assert out_big.shape == (2304, 1), out_big.shape
    assert jnp.allclose(out1, ref_fn(x_single), atol=1e-3, rtol=1e-3), (out1, ref_fn(x_single))
    assert jnp.allclose(out_b, ref_fn(x_batch), atol=1e-3, rtol=1e-3)
    assert jnp.allclose(out_big, ref_fn(x_big), atol=1e-3, rtol=1e-3)

    print("KERNEL_OK")
</pallas_src>

<mosaic_0001>
module attributes {stable_mosaic.version = 11 : i64} {
  func.func @_mlp_kernel(%arg0: i32, %arg1: memref<8x8xf32, #tpu.memory_space<vmem>>, %arg2: memref<8x128xf32, #tpu.memory_space<vmem>>, %arg3: memref<8x1xf32, #tpu.memory_space<vmem>>) attributes {dimension_semantics = [#tpu.dimension_semantics<parallel>], iteration_bounds = array<i64: 1>, scalar_prefetch = 0 : i64, scratch_operands = 0 : i64, tpu.core_type = #tpu.core_type<tc>, window_params = [{transform_indices = @transform_0, window_bounds = array<i64: 8, 8>}, {pipeline_mode = #tpu.pipeline_mode<synchronous>, transform_indices = @transform_1, window_bounds = array<i64: 8, 128>}, {transform_indices = @transform_2, window_bounds = array<i64: 8, 1>}]} {
    %c0 = arith.constant 0 : index
    %c0_0 = arith.constant 0 : index
    %0 = vector.load %arg1[%c0, %c0_0] : memref<8x8xf32, #tpu.memory_space<vmem>>, vector<8x8xf32>
    %c0_1 = arith.constant 0 : index
    %c0_2 = arith.constant 0 : index
    %1 = vector.load %arg2[%c0_1, %c0_2] : memref<8x128xf32, #tpu.memory_space<vmem>>, vector<8x128xf32>
    %cst = arith.constant dense<0.000000e+00> : vector<8x128xf32>
    %2 = tpu.matmul %0, %1, %cst {dimension_numbers = #tpu.dot_dimension_numbers<[1], [0], [0], [1], [0, 0, 1, 1], [], []>} : vector<8x8xf32>, vector<8x128xf32>, vector<8x128xf32> -> vector<8x128xf32>
    %cst_3 = arith.constant 0.000000e+00 : f32
    %3 = vector.broadcast %cst_3 : f32 to vector<8x128xf32>
    %4 = arith.maximumf %2, %3 : vector<8x128xf32>
    %5 = vector.extract_strided_slice %1 {offsets = [6, 0], sizes = [1, 128], strides = [1, 1]} : vector<8x128xf32> to vector<1x128xf32>
    %6 = vector.broadcast %5 : vector<1x128xf32> to vector<8x128xf32>
    %7 = arith.mulf %4, %6 : vector<8x128xf32>
    %cst_4 = arith.constant dense<0.000000e+00> : vector<8xf32>
    %8 = vector.multi_reduction <add>, %7, %cst_4 [1] : vector<8x128xf32> to vector<8xf32>
    %9 = vector.shape_cast %8 : vector<8xf32> to vector<8x1xf32>
    %cst_5 = arith.constant 0.000000e+00 : f32
    %10 = vector.broadcast %cst_5 : f32 to vector<8x1xf32>
    %11 = arith.subf %10, %9 : vector<8x1xf32>
    %12 = math.exp %11 : vector<8x1xf32>
    %cst_6 = arith.constant 1.000000e+00 : f32
    %13 = vector.broadcast %cst_6 : f32 to vector<8x1xf32>
    %14 = arith.addf %13, %12 : vector<8x1xf32>
    %cst_7 = arith.constant 1.000000e+00 : f32
    %15 = vector.broadcast %cst_7 : f32 to vector<8x1xf32>
    %16 = arith.divf %15, %14 : vector<8x1xf32>
    %c0_8 = arith.constant 0 : index
    %c0_9 = arith.constant 0 : index
    %17 = vector.load %arg3[%c0_8, %c0_9] : memref<8x1xf32, #tpu.memory_space<vmem>>, vector<8x1xf32>
    tpu.vector_store %arg3[%c0_8, %c0_9], %16 {strides = array<i32>} : memref<8x1xf32, #tpu.memory_space<vmem>>, vector<8x1xf32>,
    return
  }
  func.func @transform_0(%arg0: i32) -> (i32, i32) {
    %c0_i32 = arith.constant 0 : i32
    %c0_i32_0 = arith.constant 0 : i32
    return %arg0, %c0_i32 : i32, i32
  }
  func.func @transform_1(%arg0: i32) -> (i32, i32) {
    %c0_i32 = arith.constant 0 : i32
    %c0_i32_0 = arith.constant 0 : i32
    %c0_i32_1 = arith.constant 0 : i32
    return %c0_i32, %c0_i32_0 : i32, i32
  }
  func.func @transform_2(%arg0: i32) -> (i32, i32) {
    %c0_i32 = arith.constant 0 : i32
    %c0_i32_0 = arith.constant 0 : i32
    return %arg0, %c0_i32 : i32, i32
  }
}

</mosaic_0001>

<llo_original>
// kernel: simple_nn_1_forward.1
$region0: #{simple_nn_1_forward.1}
  #allocation0 [shape = 'u32[]', space=smem, size = 0x4, offset = 0x4, fixed_abs, tag = 'smem constant byte address 0x4 - core index']
  #allocation1 [shape = 'u32[144,128]{1,0:T(1,128)}', space=vmem, size = 0x12000, scoped, tag = 'internal scratch']
  %s0 = inlined_call_operand.vmem [shape: f32[8,8], index: 0, kind: input, shape index: {}]
  %s1 = inlined_call_operand.vmem [shape: f32[8,128], index: 1, kind: input, shape index: {}]
  %s2 = inlined_call_operand.vmem [shape: f32[8,1], index: 2, kind: output, shape index: {}]
  %s3 = sld [smem:[#allocation0]]
  $region18: #{simple_nn_1_forward.1} parent=0
    _
  %s5 = ssub.s32 1, %s3
  %s6 = scalar_select 0, %s5, %s3
  // Predicated region
  $region2: #{simple_nn_1_forward.1} parent=0 // pred_check
    _
  $region3: #{simple_nn_1_forward.1} parent=0 // pred_check_branch
    %8 = sbr.rel (0) target = $region5
  $region4: #{simple_nn_1_forward.1} parent=0 // pred_region
    _
  $region5: #{simple_nn_1_forward.1} parent=0 // pred_fallthru
    _
  // Predicated region
  $region6: #{simple_nn_1_forward.1} parent=0 // pred_check
    _
  $region7: #{simple_nn_1_forward.1} parent=0 // pred_check_branch
    %10 = sbr.rel (0) target = $region9
  $region8: #{simple_nn_1_forward.1} parent=0 // pred_region
    _
  $region9: #{simple_nn_1_forward.1} parent=0 // pred_fallthru
    _
  %v11 = vld [vmem:[%s0] sm:$0xff]
  %v12 = vld [vmem:[%s1] sm:$0xff]
  %vm13 = vcmask 64512
  %v15 = vsel %vm13, %v11, 0
  %17 = vmatprep.subr.mxu0 0.0
  %18 = vmatpush1.msra.mxu0 0.0
  %19 = vmatprep.subr.mxu0 0.0
  %20 = vmatpush1.msra.mxu0 0.0
  %21 = vmatprep.subr.mxu0 0.0
  %22 = vmatpush1.msra.mxu0 0.0
  %23 = vmatprep.subr.mxu0 0.0
  %24 = vmatpush1.msra.mxu0 0.0
  %25 = vmatprep.subr.mxu0 0.0
  %26 = vmatpush1.msra.mxu0 0.0
  %27 = vmatprep.subr.mxu0 0.0
  %28 = vmatpush1.msra.mxu0 0.0
  %29 = vmatprep.subr.mxu0 0.0
  %30 = vmatpush1.msra.mxu0 0.0
  %31 = vmatprep.subr.mxu0 0.0
  %32 = vmatpush1.msra.mxu0 0.0
  %33 = vmatprep.subr.mxu0 0.0
  %34 = vmatpush1.msra.mxu0 0.0
  %35 = vmatprep.subr.mxu0 0.0
  %36 = vmatpush1.msra.mxu0 0.0
  %37 = vmatprep.subr.mxu0 0.0
  %38 = vmatpush1.msra.mxu0 0.0
  %39 = vmatprep.subr.mxu0 0.0
  %40 = vmatpush1.msra.mxu0 0.0
  %41 = vmatprep.subr.mxu0 0.0
  %42 = vmatpush1.msra.mxu0 0.0
  %43 = vmatprep.subr.mxu0 0.0
  %44 = vmatpush1.msra.mxu0 0.0
  %45 = vmatprep.subr.mxu0 0.0
  %46 = vmatpush1.msra.mxu0 0.0
  %47 = vmatprep.subr.mxu0 0.0
  %48 = vmatpush1.msra.mxu0 %v12
  %49 = vmatprep.subr.mxu0 0.0
  %50 = vmatpush2.msra.mxu0 0.0
  %51 = vmatprep.subr.mxu0 0.0
  %52 = vmatpush2.msra.mxu0 0.0
  %53 = vmatprep.subr.mxu0 0.0
  %54 = vmatpush2.msra.mxu0 0.0
  %55 = vmatprep.subr.mxu0 0.0
  %56 = vmatpush2.msra.mxu0 0.0
  %57 = vmatprep.subr.mxu0 0.0
  %58 = vmatpush2.msra.mxu0 0.0
  %59 = vmatprep.subr.mxu0 0.0
  %60 = vmatpush2.msra.mxu0 0.0
  %61 = vmatprep.subr.mxu0 0.0
  %62 = vmatpush2.msra.mxu0 0.0
  %63 = vmatprep.subr.mxu0 0.0
  %64 = vmatpush2.msra.mxu0 0.0
  %65 = vmatprep.subr.mxu0 0.0
  %66 = vmatpush2.msra.mxu0 0.0
  %67 = vmatprep.subr.mxu0 0.0
  %68 = vmatpush2.msra.mxu0 0.0
  %69 = vmatprep.subr.mxu0 0.0
  %70 = vmatpush2.msra.mxu0 0.0
  %71 = vmatprep.subr.mxu0 0.0
  %72 = vmatpush2.msra.mxu0 0.0
  %73 = vmatprep.subr.mxu0 0.0
  %74 = vmatpush2.msra.mxu0 0.0
  %75 = vmatprep.subr.mxu0 0.0
  %76 = vmatpush2.msra.mxu0 0.0
  %77 = vmatprep.subr.mxu0 0.0
  %78 = vmatpush2.msra.mxu0 0.0
  %79 = vmatprep.subr.mxu0 0.0
  %80 = vmatpush2.msra.mxu0 0.0
  %81 = vmatprep.mubr.f32.mxu0 0.0
  %82 = vmatmul.mubr.f32.gmra.mxu0 %v15
  %v83 = vpop.f32.mrf.mxu0
  %v84 = vadd.f32 0.0, %v83
  %v85 = vpop.f32.mrf.mxu0
  %86 = vdwg.mxu0
  %v87 = vmax.f32 %v84, 0.0
  %v88 = vlaneseq
  %v89 = vshrl.u32 %v88, 7
  %v90 = vsub.s32 6, %v89
  %v91 = vrot.slane %v12, %v90
  %v92 = vmul.f32 %v87, %v91
  %93 = vadd.xlane.f32.xlu0 %v92
  %v94 = vpop.xlane.xlu0 %93
  %v95 = vsub.f32 0.0, %v94
  %v96 = vmul.f32 %v95, 1.442695
  %v97 = vpow.pop %v96
  %v98 = vadd.f32 %v97, 1.0
  %v99 = vrcp.pop %v98
  %v100 = vmul.f32 1.0, %v99
  %vm101 = vcmask 7168
  %102 = vst.msk [vmem:[%s2] sm:$0xff] %vm101, %v100
  // Predicated region
  $region10: #{simple_nn_1_forward.1} parent=0 // pred_check
    _
  $region11: #{simple_nn_1_forward.1} parent=0 // pred_check_branch
    %104 = sbr.rel (0) target = $region13
  $region12: #{simple_nn_1_forward.1} parent=0 // pred_region
    _
  $region13: #{simple_nn_1_forward.1} parent=0 // pred_fallthru
    _
  // Predicated region
  $region14: #{simple_nn_1_forward.1} parent=0 // pred_check
    _
  $region15: #{simple_nn_1_forward.1} parent=0 // pred_check_branch
    %106 = sbr.rel (0) target = $region17
  $region16: #{simple_nn_1_forward.1} parent=0 // pred_region
    _
  $region17: #{simple_nn_1_forward.1} parent=0 // pred_fallthru
    _

</llo_original>
